<compile_context>
chip_gen: v7x
topology: tpu7x:2x2x1
jax: 0.10.0
libtpu: 0.0.40
codegen_flags: <defaults>
</compile_context>

<pallas_src>
import jax
import jax.numpy as jnp
from jax import lax
from jax.experimental import pallas as pl
from jax.experimental.pallas import tpu as pltpu


# -----------------------------------------------------------------------------
# Tiling helpers
# -----------------------------------------------------------------------------
_LANE = 128
_MAX_ROW_TILE = 256                      # max class rows per focal block
_TARGET_BLOCK_BYTES = 4 * 1024 * 1024    # ~4 MiB f32 blocks (good on v5e/v6e/v7x)
_VMEM_LIMIT = 48 * 1024 * 1024           # fits v7x's 64 MiB with headroom
_IGNORE = 255


def _cdiv(a, b):
    return -(-a // b)


def _round_up(x, m):
    return ((x + m - 1) // m) * m


def _choose_lane_tile(total_p, rows):
    """Lane tile: multiple of 128, rows*tile*4B ~= _TARGET_BLOCK_BYTES, capped
    at the 128-rounded problem width (small problems become a single block)."""
    cover = _round_up(max(total_p, 1), _LANE)
    want = (_TARGET_BLOCK_BYTES // (4 * max(rows, 1))) // _LANE * _LANE
    return max(_LANE, min(want, cover))


def _pad_axis(x, axis, target, value):
    cur = x.shape[axis]
    if cur == target:
        return x
    widths = [(0, 0)] * x.ndim
    widths[axis] = (0, target - cur)
    return jnp.pad(x, widths, constant_values=value)


def _stable_log1p(e):
    """log1p(e) for e in (0, 1] using only log/where (no log1p lowering needed).

    For e <= 1e-4 the two-term series differs from log1p(e) by < e^3/3, below
    one f32 ulp of the result, so this matches the stable BCE-with-logits form.
    """
    return jnp.where(e > 1e-4, jnp.log(1.0 + e), e * (1.0 - 0.5 * e))


# -----------------------------------------------------------------------------
# Pallas kernels + wrappers
# -----------------------------------------------------------------------------
def _sigmoid_focal_loss_sum(logits_bcp, labels_b1p, num_classes, num_pixels,
                            c_tile, p_tile):
    """Sum over all elements of sigmoid focal loss (alpha=0.25, gamma=2).

    logits_bcp: (B, C, P) f32 logits — UNPADDED; ragged C / P tiles are masked
                in-kernel so no host-side copy of the big tensor is made.
    labels_b1p: (B, 1, P_pad) int32 label map (padded with 255 to a p_tile
                multiple; padded pixels are masked anyway).
    """
    B = logits_bcp.shape[0]
    n_ct = _cdiv(num_classes, c_tile)
    n_pt = _cdiv(num_pixels, p_tile)

    def kernel(x_ref, lab_ref, o_ref, acc_ref):
        ci = pl.program_id(1)
        pj = pl.program_id(2)

        @pl.when(pj == 0)
        def _init():
            acc_ref[...] = jnp.zeros_like(acc_ref)

        x = x_ref[0].astype(jnp.float32)                 # (c_tile, p_tile) logits
        lab = lab_ref[0]                                 # (1, p_tile) int32 labels

        # Ragged-tile mask (replaces host-side padding of the logits tensor).
        cls = lax.broadcasted_iota(jnp.int32, x.shape, 0) + ci * c_tile
        pix = lax.broadcasted_iota(jnp.int32, x.shape, 1) + pj * p_tile
        valid = jnp.logical_and(cls < num_classes, pix < num_pixels)

        # In-kernel one-hot from the label map: (B, C, P) target never hits HBM.
        # (255-labelled pixels get target 0 but still count as negatives and in
        #  the /P normalizer, exactly like the PyTorch reference.)
        t = jnp.where(jnp.logical_and(lab == cls, lab != _IGNORE), 1.0, 0.0)

        # Stable BCE-with-logits + focal weighting (gamma=2, alpha=0.25).
        e = jnp.exp(-jnp.abs(x))
        ce = jnp.maximum(x, 0.0) - x * t + _stable_log1p(e)
        prob = 0.5 * jnp.tanh(0.5 * x) + 0.5             # sigmoid, single EUP op
        one_m_pt = prob + t - 2.0 * prob * t             # == 1 - p_t  (t in {0,1})
        alpha_t = 0.75 - 0.5 * t                         # == 0.25*t + 0.75*(1-t)
        loss = alpha_t * ce * one_m_pt * one_m_pt
        loss = jnp.where(valid, loss, 0.0)               # where, not *, kills NaNs

        # Per-row partials in VMEM scratch; scalar reduce only on the last step.
        acc_ref[...] += jnp.sum(loss, axis=1, keepdims=True)

        @pl.when(pj == pl.num_programs(2) - 1)
        def _finalize():
            o_ref[...] = jnp.sum(acc_ref[...]).reshape(1, 1, 1, 1)

    partial = pl.pallas_call(
        kernel,
        out_shape=jax.ShapeDtypeStruct((B, n_ct, 1, 1), jnp.float32),
        grid=(B, n_ct, n_pt),
        in_specs=[
            pl.BlockSpec((1, c_tile, p_tile), lambda b, ci, pj: (b, ci, pj)),
            pl.BlockSpec((1, 1, p_tile), lambda b, ci, pj: (b, 0, pj)),
        ],
        out_specs=pl.BlockSpec((1, 1, 1, 1), lambda b, ci, pj: (b, ci, 0, 0)),
        scratch_shapes=[pltpu.VMEM((c_tile, 1), jnp.float32)],
        compiler_params=pltpu.CompilerParams(
            dimension_semantics=("parallel", "parallel", "arbitrary"),
            vmem_limit_bytes=_VMEM_LIMIT),
    )(logits_bcp, labels_b1p)
    return jnp.sum(partial)


def _dice_partial_sums(logits_mp, targets_mp, num_pixels, p_tile):
    """Per-mask (intersection, denominator) partial sums over parallel P chunks.

    logits_mp:  (M, Pd) f32   (unpadded; ragged last P tile masked in-kernel)
    targets_mp: (M, Pd) bf16  binary masks (bf16 is exact for {0,1})
    Returns (inter, denom), each (M,) f32; the 1-(2a+1)/(b+1) finalize uses an
    exact divide in JAX.
    """
    M = logits_mp.shape[0]
    n_pt = _cdiv(num_pixels, p_tile)

    def kernel(x_ref, t_ref, inter_ref, denom_ref):
        pj = pl.program_id(0)
        x = x_ref[...].astype(jnp.float32)               # (M, p_tile)
        t = t_ref[...].astype(jnp.float32)
        pix = lax.broadcasted_iota(jnp.int32, x.shape, 1) + pj * p_tile
        valid = pix < num_pixels
        s = 0.5 * jnp.tanh(0.5 * x) + 0.5                # sigmoid
        s = jnp.where(valid, s, 0.0)
        t = jnp.where(valid, t, 0.0)
        inter_ref[0] = jnp.sum(s * t, axis=1, keepdims=True)
        denom_ref[0] = jnp.sum(s + t, axis=1, keepdims=True)

    inter_p, denom_p = pl.pallas_call(
        kernel,
        out_shape=(jax.ShapeDtypeStruct((n_pt, M, 1), jnp.float32),
                   jax.ShapeDtypeStruct((n_pt, M, 1), jnp.float32)),
        grid=(n_pt,),
        in_specs=[
            pl.BlockSpec((M, p_tile), lambda pj: (0, pj)),
            pl.BlockSpec((M, p_tile), lambda pj: (0, pj)),
        ],
        out_specs=(pl.BlockSpec((1, M, 1), lambda pj: (pj, 0, 0)),
                   pl.BlockSpec((1, M, 1), lambda pj: (pj, 0, 0))),
        compiler_params=pltpu.CompilerParams(
            dimension_semantics=("parallel",),
            vmem_limit_bytes=_VMEM_LIMIT),
    )(logits_mp, targets_mp)
    return jnp.sum(inter_p[:, :, 0], axis=0), jnp.sum(denom_p[:, :, 0], axis=0)


# -----------------------------------------------------------------------------
# JAX glue reproducing SegPlusCriterion.forward semantics
# -----------------------------------------------------------------------------
def _bilinear_resize(x, size):
    """F.interpolate(mode='bilinear', align_corners=False) equivalent (glue)."""
    if x.shape[-2:] == tuple(size):
        return x
    # TODO(synk): jax.image.resize 'bilinear' matches torch align_corners=False
    # for upsampling; exact parity for downsampling is not guaranteed.
    return jax.image.resize(x, x.shape[:-2] + tuple(size), method="bilinear")


class SegPlusCriterion:
    def __init__(self, num_classes, weight_dict, losses, eos_coef=0.1):
        self.num_classes = num_classes
        self.weight_dict = weight_dict
        self.eos_coef = eos_coef
        self.losses = losses
        empty_weight = jnp.ones((num_classes + 1,), jnp.float32)
        self.empty_weight = empty_weight.at[-1].set(eos_coef)

    # ---- head-independent target prep (hoisted out of the aux loop) ---------
    def _prepare_mask_targets(self, pred_masks, targets, indices):
        B, C = pred_masks.shape[:2]
        label_maps = jnp.stack([t["masks"] for t in targets]).astype(jnp.int32)
        H, W = label_maps.shape[-2:]
        P = H * W

        # Focal tiling: full-C row blocks when C is small; grow the lane tile so
        # each block is ~4 MiB.  Only the tiny label map gets padded.
        c_tile = C if C <= _MAX_ROW_TILE else _MAX_ROW_TILE
        p_tile_f = _choose_lane_tile(P, c_tile)
        n_pt_f = _cdiv(P, p_tile_f)
        labels_b1p = _pad_axis(label_maps.reshape(B, 1, P), 2,
                               n_pt_f * p_tile_f, _IGNORE)

        # ---- dice targets (matched GT masks), shared across all aux heads ----
        batch_idx, src_idx = self._get_src_permutation_idx(indices)
        tgt_batch_idx, tgt_idx = self._get_tgt_permutation_idx(indices)

        n_max = max(int(t["target_masks"].shape[0]) for t in targets)
        padded_gt = [_pad_axis(t["target_masks"].astype(jnp.float32), 0, n_max, 0.0)
                     for t in targets]
        gt_stack = jnp.stack(padded_gt)                    # (B, n_max, Ht, Wt)
        Ht, Wt = gt_stack.shape[-2:]
        Pd = Ht * Wt
        target_dice = gt_stack[tgt_batch_idx, tgt_idx]     # (M, Ht, Wt)
        M = int(target_dice.shape[0])
        # bf16 is exact for binary {0,1} masks; halves the dice target HBM stream.
        dice_targets = target_dice.reshape(M, Pd).astype(jnp.bfloat16)
        p_tile_d = _choose_lane_tile(Pd, max(M, 1))

        return dict(
            C=C, H=H, W=W, P=P, c_tile=c_tile, p_tile_f=p_tile_f,
            labels_b1p=labels_b1p,
            batch_idx=batch_idx, src_idx=src_idx,
            dice_targets=dice_targets, M=M, Ht=Ht, Wt=Wt, Pd=Pd,
            p_tile_d=p_tile_d,
        )

    # ---- masks loss ----------------------------------------------------------
    def loss_masks(self, outputs, targets, indices, num_masks, prepared=None):
        if prepared is None:
            prepared = self._prepare_mask_targets(outputs["pred_masks"], targets,
                                                  indices)

        src_masks = outputs["pred_masks"]                  # (B, C, H_, W_)
        B, C = src_masks.shape[:2]
        H, W, P = prepared["H"], prepared["W"], prepared["P"]

        # ---- focal loss ("loss_mask"): in-kernel one-hot, no host padding ----
        src = src_masks.reshape(B * C, src_masks.shape[-2], src_masks.shape[-1])
        src = _bilinear_resize(src[:, None], (H, W))[:, 0]
        src = src.reshape(B, C, P)
        focal_sum = _sigmoid_focal_loss_sum(
            src, prepared["labels_b1p"], C, P,
            prepared["c_tile"], prepared["p_tile_f"])
        # mean over P pixels, summed over (B*C) masks, divided by num_masks.
        loss_mask = focal_sum / (P * num_masks)

        # ---- dice loss ("loss_dice") over matched masks -----------------------
        M = prepared["M"]
        if M == 0:
            return {"loss_mask": loss_mask, "loss_dice": jnp.zeros((), jnp.float32)}

        src_d = src_masks[prepared["batch_idx"], prepared["src_idx"]]  # (M,H_,W_)
        src_d = _bilinear_resize(src_d[:, None], (prepared["Ht"], prepared["Wt"]))[:, 0]
        src_d = src_d.reshape(M, prepared["Pd"])
        inter, denom = _dice_partial_sums(src_d, prepared["dice_targets"],
                                          prepared["Pd"], prepared["p_tile_d"])
        per_mask = 1.0 - (2.0 * inter + 1.0) / (denom + 1.0)  # exact divide
        loss_dice = jnp.sum(per_mask) / num_masks

        return {"loss_mask": loss_mask, "loss_dice": loss_dice}

    # ---- permutation index helpers (plain python/JAX glue) -------------------
    def _get_src_permutation_idx(self, indices):
        batch_idx = jnp.concatenate(
            [jnp.full_like(src, i) for i, (src, _) in enumerate(indices)])
        src_idx = jnp.concatenate([src for src, _ in indices])
        return batch_idx, src_idx

    def _get_tgt_permutation_idx(self, indices):
        batch_idx = jnp.concatenate(
            [jnp.full_like(tgt, i) for i, (_, tgt) in enumerate(indices)])
        tgt_idx = jnp.concatenate([tgt for _, tgt in indices])
        return batch_idx, tgt_idx

    def get_loss(self, loss, outputs, targets, indices, num_masks, prepared=None):
        loss_map = {"masks": self.loss_masks}
        assert loss in loss_map, f"do you really want to compute {loss} loss?"
        return loss_map[loss](outputs, targets, indices, num_masks, prepared)

    # ---- forward --------------------------------------------------------------
    def forward(self, outputs, targets):
        labels = [t["labels"] for t in targets]
        indices = [(lab, jnp.arange(len(lab), dtype=jnp.int32)) for lab in labels]

        num_masks = sum(int(t["labels"].shape[0]) for t in targets)
        # TODO(synk): single-host assumed (world_size == 1); no all_reduce.
        num_masks = max(float(num_masks), 1.0)

        # Targets depend only on `targets`/`indices`, not on the prediction head:
        # build once and reuse for every aux head.
        prepared = self._prepare_mask_targets(outputs["pred_masks"], targets, indices)

        losses = {}
        for loss in self.losses:
            losses.update(self.get_loss(loss, outputs, targets, indices,
                                        num_masks, prepared))

        if "aux_outputs" in outputs:
            for i, aux_outputs in enumerate(outputs["aux_outputs"]):
                for loss in ["masks"]:
                    l_dict = self.get_loss(loss, aux_outputs, targets, indices,
                                           num_masks, prepared)
                    losses.update({k + f"_{i}": v for k, v in l_dict.items()})
        return losses


# -----------------------------------------------------------------------------
# Demo
# -----------------------------------------------------------------------------
if __name__ == "__main__":
    key = jax.random.PRNGKey(0)
    B, C, H, W = 2, 4, 16, 16   # batch=2, mask channels=4, spatial=16x16

    pred_masks = jax.random.normal(key, (B, C, H, W), jnp.float32)

    # Semantic label maps with ids in [0, C) plus an ignore (255) corner region.
    base = (jnp.arange(H * W, dtype=jnp.int32) % C).reshape(H, W)
    label_maps = []
    for b in range(B):
        lm = (base + b) % C
        lm = lm.at[:4, :4].set(255)          # ignore region
        label_maps.append(lm)

    # Per-image present labels and their GT instance masks.
    labels_list = [jnp.array([1, 3], jnp.int32), jnp.array([0, 2], jnp.int32)]
    targets = []
    for b in range(B):
        gt = jnp.stack([(label_maps[b] == int(c)).astype(jnp.float32)
                        for c in labels_list[b]])          # (n_gt, H, W)
        targets.append({
            "labels": labels_list[b],
            "masks": label_maps[b],          # (H, W) int label map (255 = ignore)
            "target_masks": gt,              # (n_gt, H, W) binary instance masks
        })

    outputs = {"pred_masks": pred_masks}

    criterion = SegPlusCriterion(
        num_classes=C,
        weight_dict={"loss_mask": 20.0, "loss_dice": 1.0},
        losses=["masks"],
        eos_coef=0.1,
    )

    losses = criterion.forward(outputs, targets)
    losses = {k: jax.block_until_ready(v) for k, v in losses.items()}

    assert all(bool(jnp.isfinite(v)) for v in losses.values())
    print("KERNEL_OK")
</pallas_src>

<mosaic_0001>
module attributes {stable_mosaic.version = 11 : i64} {
  func.func @kernel(%arg0: i32, %arg1: i32, %arg2: i32, %arg3: memref<1x4x256xf32, #tpu.memory_space<vmem>>, %arg4: memref<1x1x256xi32, #tpu.memory_space<vmem>>, %arg5: memref<1x1x1x1xf32, #tpu.memory_space<vmem>>, %arg6: memref<4x1xf32, #tpu.memory_space<vmem>>) attributes {dimension_semantics = [#tpu.dimension_semantics<parallel>, #tpu.dimension_semantics<parallel>, #tpu.dimension_semantics<arbitrary>], iteration_bounds = array<i64: 2, 1, 1>, scalar_prefetch = 0 : i64, scratch_operands = 1 : i64, tpu.core_type = #tpu.core_type<tc>, window_params = [{transform_indices = @transform_0, window_bounds = array<i64: 1, 4, 256>}, {transform_indices = @transform_1, window_bounds = array<i64: 1, 1, 256>}, {transform_indices = @transform_2, window_bounds = array<i64: 1, 1, 1, 1>}]} {
    %c0_i32 = arith.constant 0 : i32
    %0 = arith.cmpi eq, %arg2, %c0_i32 : i32
    %1 = arith.extui %0 : i1 to i32
    %c0_i32_0 = arith.constant 0 : i32
    %2 = arith.cmpi ne, %1, %c0_i32_0 : i32
    scf.if %2 {
      %cst_29 = arith.constant 0.000000e+00 : f32
      %78 = vector.broadcast %cst_29 : f32 to vector<4x1xf32>
      %c0_30 = arith.constant 0 : index
      %c0_31 = arith.constant 0 : index
      %79 = vector.load %arg6[%c0_30, %c0_31] : memref<4x1xf32, #tpu.memory_space<vmem>>, vector<4x1xf32>
      tpu.vector_store %arg6[%c0_30, %c0_31], %78 {strides = array<i32>} : memref<4x1xf32, #tpu.memory_space<vmem>>, vector<4x1xf32>,
    } else {
    }
    %c0 = arith.constant 0 : index
    %c0_1 = arith.constant 0 : index
    %c0_2 = arith.constant 0 : index
    %3 = vector.load %arg3[%c0, %c0_1, %c0_2] : memref<1x4x256xf32, #tpu.memory_space<vmem>>, vector<1x4x256xf32>
    %4 = vector.shape_cast %3 : vector<1x4x256xf32> to vector<4x256xf32>
    %c0_3 = arith.constant 0 : index
    %c0_4 = arith.constant 0 : index
    %c0_5 = arith.constant 0 : index
    %5 = vector.load %arg4[%c0_3, %c0_4, %c0_5] : memref<1x1x256xi32, #tpu.memory_space<vmem>>, vector<1x1x256xi32>
    %6 = vector.shape_cast %5 : vector<1x1x256xi32> to vector<1x256xi32>
    %7 = tpu.iota {dimensions = array<i32: 0>} : vector<4x256xi32>
    %c4_i32 = arith.constant 4 : i32
    %8 = arith.muli %arg1, %c4_i32 : i32
    %9 = vector.broadcast %8 : i32 to vector<4x256xi32>
    %10 = arith.addi %7, %9 : vector<4x256xi32>
    %11 = tpu.iota {dimensions = array<i32: 1>} : vector<4x256xi32>
    %c256_i32 = arith.constant 256 : i32
    %12 = arith.muli %arg2, %c256_i32 : i32
    %13 = vector.broadcast %12 : i32 to vector<4x256xi32>
    %14 = arith.addi %11, %13 : vector<4x256xi32>
    %c4_i32_6 = arith.constant 4 : i32
    %15 = vector.broadcast %c4_i32_6 : i32 to vector<4x256xi32>
    %16 = arith.cmpi slt, %10, %15 : vector<4x256xi32>
    %c256_i32_7 = arith.constant 256 : i32
    %17 = vector.broadcast %c256_i32_7 : i32 to vector<4x256xi32>
    %18 = arith.cmpi slt, %14, %17 : vector<4x256xi32>
    %19 = arith.andi %16, %18 : vector<4x256xi1>
    %20 = vector.broadcast %6 : vector<1x256xi32> to vector<4x256xi32>
    %21 = arith.cmpi eq, %20, %10 : vector<4x256xi32>
    %c255_i32 = arith.constant 255 : i32
    %22 = vector.broadcast %c255_i32 : i32 to vector<1x256xi32>
    %23 = arith.cmpi ne, %6, %22 : vector<1x256xi32>
    %24 = vector.broadcast %23 : vector<1x256xi1> to vector<4x256xi1>
    %25 = arith.andi %21, %24 : vector<4x256xi1>
    %cst = arith.constant 1.000000e+00 : f32
    %cst_8 = arith.constant 0.000000e+00 : f32
    %26 = vector.broadcast %cst : f32 to vector<4x256xf32>
    %27 = vector.broadcast %cst_8 : f32 to vector<4x256xf32>
    %28 = arith.select %25, %26, %27 : vector<4x256xi1>, vector<4x256xf32>
    %29 = math.absf %4 : vector<4x256xf32>
    %cst_9 = arith.constant 0.000000e+00 : f32
    %30 = vector.broadcast %cst_9 : f32 to vector<4x256xf32>
    %31 = arith.subf %30, %29 : vector<4x256xf32>
    %32 = math.exp %31 : vector<4x256xf32>
    %cst_10 = arith.constant 0.000000e+00 : f32
    %33 = vector.broadcast %cst_10 : f32 to vector<4x256xf32>
    %34 = arith.maximumf %4, %33 : vector<4x256xf32>
    %35 = arith.mulf %4, %28 : vector<4x256xf32>
    %36 = arith.subf %34, %35 : vector<4x256xf32>
    %cst_11 = arith.constant 9.99999974E-5 : f32
    %37 = vector.broadcast %cst_11 : f32 to vector<4x256xf32>
    %38 = arith.cmpf ogt, %32, %37 : vector<4x256xf32>
    %cst_12 = arith.constant 1.000000e+00 : f32
    %39 = vector.broadcast %cst_12 : f32 to vector<4x256xf32>
    %40 = arith.addf %39, %32 : vector<4x256xf32>
    %41 = math.log %40 : vector<4x256xf32>
    %cst_13 = arith.constant 5.000000e-01 : f32
    %42 = vector.broadcast %cst_13 : f32 to vector<4x256xf32>
    %43 = arith.mulf %42, %32 : vector<4x256xf32>
    %cst_14 = arith.constant 1.000000e+00 : f32
    %44 = vector.broadcast %cst_14 : f32 to vector<4x256xf32>
    %45 = arith.subf %44, %43 : vector<4x256xf32>
    %46 = arith.mulf %32, %45 : vector<4x256xf32>
    %47 = arith.select %38, %41, %46 : vector<4x256xi1>, vector<4x256xf32>
    %48 = arith.addf %36, %47 : vector<4x256xf32>
    %cst_15 = arith.constant 5.000000e-01 : f32
    %49 = vector.broadcast %cst_15 : f32 to vector<4x256xf32>
    %50 = arith.mulf %49, %4 : vector<4x256xf32>
    %51 = math.tanh %50 : vector<4x256xf32>
    %cst_16 = arith.constant 5.000000e-01 : f32
    %52 = vector.broadcast %cst_16 : f32 to vector<4x256xf32>
    %53 = arith.mulf %52, %51 : vector<4x256xf32>
    %cst_17 = arith.constant 5.000000e-01 : f32
    %54 = vector.broadcast %cst_17 : f32 to vector<4x256xf32>
    %55 = arith.addf %53, %54 : vector<4x256xf32>
    %56 = arith.addf %55, %28 : vector<4x256xf32>
    %cst_18 = arith.constant 2.000000e+00 : f32
    %57 = vector.broadcast %cst_18 : f32 to vector<4x256xf32>
    %58 = arith.mulf %57, %55 : vector<4x256xf32>
    %59 = arith.mulf %58, %28 : vector<4x256xf32>
    %60 = arith.subf %56, %59 : vector<4x256xf32>
    %cst_19 = arith.constant 5.000000e-01 : f32
    %61 = vector.broadcast %cst_19 : f32 to vector<4x256xf32>
    %62 = arith.mulf %61, %28 : vector<4x256xf32>
    %cst_20 = arith.constant 7.500000e-01 : f32
    %63 = vector.broadcast %cst_20 : f32 to vector<4x256xf32>
    %64 = arith.subf %63, %62 : vector<4x256xf32>
    %65 = arith.mulf %64, %48 : vector<4x256xf32>
    %66 = arith.mulf %65, %60 : vector<4x256xf32>
    %67 = arith.mulf %66, %60 : vector<4x256xf32>
    %cst_21 = arith.constant 0.000000e+00 : f32
    %68 = vector.broadcast %cst_21 : f32 to vector<4x256xf32>
    %69 = arith.select %19, %67, %68 : vector<4x256xi1>, vector<4x256xf32>
    %c0_22 = arith.constant 0 : index
    %c0_23 = arith.constant 0 : index
    %70 = vector.load %arg6[%c0_22, %c0_23] : memref<4x1xf32, #tpu.memory_space<vmem>>, vector<4x1xf32>
    %cst_24 = arith.constant dense<0.000000e+00> : vector<4xf32>
    %71 = vector.multi_reduction <add>, %69, %cst_24 [1] : vector<4x256xf32> to vector<4xf32>
    %72 = vector.shape_cast %71 : vector<4xf32> to vector<4x1xf32>
    %73 = arith.addf %70, %72 : vector<4x1xf32>
    %c0_25 = arith.constant 0 : index
    %c0_26 = arith.constant 0 : index
    %74 = vector.load %arg6[%c0_25, %c0_26] : memref<4x1xf32, #tpu.memory_space<vmem>>, vector<4x1xf32>
    tpu.vector_store %arg6[%c0_25, %c0_26], %73 {strides = array<i32>} : memref<4x1xf32, #tpu.memory_space<vmem>>, vector<4x1xf32>,
    %c0_i32_27 = arith.constant 0 : i32
    %75 = arith.cmpi eq, %arg2, %c0_i32_27 : i32
    %76 = arith.extui %75 : i1 to i32
    %c0_i32_28 = arith.constant 0 : i32
    %77 = arith.cmpi ne, %76, %c0_i32_28 : i32
    scf.if %77 {
      %c0_29 = arith.constant 0 : index
      %c0_30 = arith.constant 0 : index
      %78 = vector.load %arg6[%c0_29, %c0_30] : memref<4x1xf32, #tpu.memory_space<vmem>>, vector<4x1xf32>
      %79 = vector.shape_cast %78 : vector<4x1xf32> to vector<1x4x1xf32>
      %cst_31 = arith.constant dense<0.000000e+00> : vector<1xf32>
      %80 = vector.multi_reduction <add>, %79, %cst_31 [1, 2] : vector<1x4x1xf32> to vector<1xf32>
      %81 = vector.shape_cast %80 : vector<1xf32> to vector<1x1x1xf32>
      %82 = vector.extract %81[0, 0, 0] : f32 from vector<1x1x1xf32>
      %83 = vector.broadcast %82 : f32 to vector<1x1x1x1xf32>
      %c0_32 = arith.constant 0 : index
      %c0_33 = arith.constant 0 : index
      %c0_34 = arith.constant 0 : index
      %c0_35 = arith.constant 0 : index
      %84 = vector.load %arg5[%c0_32, %c0_33, %c0_34, %c0_35] : memref<1x1x1x1xf32, #tpu.memory_space<vmem>>, vector<1x1x1x1xf32>
      tpu.vector_store %arg5[%c0_32, %c0_33, %c0_34, %c0_35], %83 {strides = array<i32>} : memref<1x1x1x1xf32, #tpu.memory_space<vmem>>, vector<1x1x1x1xf32>,
    } else {
    }
    return
  }
  func.func @transform_0(%arg0: i32, %arg1: i32, %arg2: i32) -> (i32, i32, i32) {
    %c0_i32 = arith.constant 0 : i32
    return %arg0, %arg1, %arg2 : i32, i32, i32
  }
  func.func @transform_1(%arg0: i32, %arg1: i32, %arg2: i32) -> (i32, i32, i32) {
    %c0_i32 = arith.constant 0 : i32
    %c0_i32_0 = arith.constant 0 : i32
    return %arg0, %c0_i32, %arg2 : i32, i32, i32
  }
  func.func @transform_2(%arg0: i32, %arg1: i32, %arg2: i32) -> (i32, i32, i32, i32) {
    %c0_i32 = arith.constant 0 : i32
    %c0_i32_0 = arith.constant 0 : i32
    %c0_i32_1 = arith.constant 0 : i32
    return %arg0, %arg1, %c0_i32, %c0_i32_0 : i32, i32, i32, i32
  }
}

</mosaic_0001>

<llo_original>
// kernel: tpu_custom_call.1
$region0: #{tpu_custom_call.1}
  #allocation0 [shape = 'u32[]', space=smem, size = 0x4, offset = 0x4, fixed_abs, tag = 'smem constant byte address 0x4 - core index']
  #allocation1 [shape = 'u32[144,128]{1,0:T(1,128)}', space=vmem, size = 0x12000, scoped, tag = 'internal scratch']
  #allocation2 [shape = 'f32[4,1]{1,0:T(4,128)}', space=vmem, size = 0x800, scoped, tag = 'scratch operand']
  %s0 = inlined_call_operand.hbm [shape: f32[2,4,256], index: 0, kind: input, shape index: {}]
  %s1 = inlined_call_operand.hbm [shape: s32[2,1,256], index: 1, kind: input, shape index: {}]
  %s2 = inlined_call_operand.vmem [shape: f32[2,1,1,1], index: 2, kind: output, shape index: {}]
  %s3 = sld [smem:[#allocation0]]
  $region57: #{tpu_custom_call.1} parent=0
    _
  %s5 = ssub.s32 1, %s3
  %s6 = scalar_select 0, %s5, %s3
  $region1: #{tpu_custom_call.1} parent=0
    #allocation3 [shape = 'u8[8192]{0}', space=vmem, size = 0x2000, scoped, tag = 'input window, operand 0']
    #allocation4 [shape = 's32[2]{0}', space=sflag, size = 0x8, scoped, tag = 'scoped memory for tpu_custom_call.1']
    #allocation5 [shape = 'u8[2048]{0}', space=vmem, size = 0x800, scoped, tag = 'input window, operand 1']
    #allocation6 [shape = 's32[2]{0}', space=sflag, size = 0x8, scoped, tag = 'scoped memory for tpu_custom_call.1']
    %7 = vsyncpa [#allocation4], 0
    %s8 = scalar_lea.sflag [#allocation4], 1
    %9 = vsyncpa %s8, 0
    %10 = vsyncpa [#allocation6], 0
    %s11 = scalar_lea.sflag [#allocation6], 1
    %12 = vsyncpa %s11, 0
    loop: start=0, step=1, limit=4
    $region2: #{tpu_custom_call.1} parent=1 // loop_pre_header
      _
    $region3: #{tpu_custom_call.1} parent=1 // loop_header
      %s14 = sphi 0, %s18
      %p15 = scmp.ge.s32.totalorder %s14, 4
      %s21 = sphi 0, %s40
      %s22 = sphi 0, %s36
      %s23 = sphi 0, %s32
      %s24 = sphi 0, %s21
      %s25 = sphi 0, %s22
      %s26 = sphi 0, %s23
      %s27 = sphi 0, %s24
      %s28 = sphi 0, %s25
      %s29 = sphi 0, %s26
      %s47 = sphi 0, %s49
      %s50 = sphi 0, %s47
      %s51 = sphi 0, %s50
      %s67 = sphi 0, %s51
      %s75 = sphi 0, %s77
      %s78 = sphi 0, %s75
      %s79 = sphi 0, %s78
      %s95 = sphi 0, %s79
      %s103 = sphi 0, %s105
      %s106 = sphi 0, %s103
      %s107 = sphi 0, %s106
      %s123 = sphi 0, %s107
    $region4: #{tpu_custom_call.1} parent=1 // loop_header_branch
      %17 = sbr.rel (%p15) target = $region8
    $region5: #{tpu_custom_call.1} parent=1 // loop_body
      %s19 = ssub.s32 %s14, 1
      %s20 = ssub.s32 %s14, 2
      %s30 = sadd.s32 1, %s23
      %p31 = scmp.ge.s32.totalorder %s30, 1
      %s32 = scalar_select %p31, 0, %s30
      %s33 = sadd.s32 1, %s22
      %s34 = scalar_select %p31, %s33, %s22
      %p35 = scmp.ge.s32.totalorder %s34, 1
      %s36 = scalar_select %p35, 0, %s34
      %s37 = sadd.s32 1, %s21
      %s38 = scalar_select %p35, %s37, %s21
      %p39 = scmp.ge.s32.totalorder %s38, 2
      %s40 = scalar_select %p39, 0, %s38
      %s41 = ssub.s32 %s21, %s40
      %s42 = ssub.s32 %s22, %s36
      %s43 = sor.u32 %s41, %s42
      %s44 = ssub.s32 %s23, %s32
      %s45 = sor.u32 %s43, %s44
      %p46 = scmp.eq.s32.totalorder %s45, 0
      %s48 = sadd.s32 %s47, 1
      %s49 = scalar_select %p46, %s47, %s48
      %p52 = pneg %p46
      %p53 = scmp.eq.s32.totalorder %s14, 1
      %p54 = por %p52, %p53
      %p55 = scmp.ne.s32.totalorder %s47, %s50
      %p56 = scmp.eq.s32.totalorder %s14, 0
      %p57 = por %p55, %p56
      %p58 = scmp.ne.s32.totalorder %s47, %s50
      %p59 = scmp.eq.s32.totalorder %s19, 1
      %p60 = por %p58, %p59
      %p61 = scmp.ne.s32.totalorder %s50, %s51
      %p62 = scmp.eq.s32.totalorder %s19, 0
      %p63 = por %p61, %p62
      %p64 = scmp.ne.s32.totalorder %s50, %s51
      %p65 = scmp.eq.s32.totalorder %s20, 1
      %p66 = por %p64, %p65
      %p68 = scmp.ne.s32.totalorder %s51, %s67
      %p69 = scmp.eq.s32.totalorder %s20, 0
      %p70 = por %p68, %p69
      %s71 = ssub.s32 %s21, %s40
      %s72 = ssub.s32 %s23, %s32
      %s73 = sor.u32 %s71, %s72
      %p74 = scmp.eq.s32.totalorder %s73, 0
      %s76 = sadd.s32 %s75, 1
      %s77 = scalar_select %p74, %s75, %s76
      %p80 = pneg %p74
      %p81 = scmp.eq.s32.totalorder %s14, 1
      %p82 = por %p80, %p81
      %p83 = scmp.ne.s32.totalorder %s75, %s78
      %p84 = scmp.eq.s32.totalorder %s14, 0
      %p85 = por %p83, %p84
      %p86 = scmp.ne.s32.totalorder %s75, %s78
      %p87 = scmp.eq.s32.totalorder %s19, 1
      %p88 = por %p86, %p87
      %p89 = scmp.ne.s32.totalorder %s78, %s79
      %p90 = scmp.eq.s32.totalorder %s19, 0
      %p91 = por %p89, %p90
      %p92 = scmp.ne.s32.totalorder %s78, %s79
      %p93 = scmp.eq.s32.totalorder %s20, 1
      %p94 = por %p92, %p93
      %p96 = scmp.ne.s32.totalorder %s79, %s95
      %p97 = scmp.eq.s32.totalorder %s20, 0
      %p98 = por %p96, %p97
      %s99 = ssub.s32 %s21, %s40
      %s100 = ssub.s32 %s22, %s36
      %s101 = sor.u32 %s99, %s100
      %p102 = scmp.eq.s32.totalorder %s101, 0
      %s104 = sadd.s32 %s103, 1
      %s105 = scalar_select %p102, %s103, %s104
      %p108 = pneg %p102
      %p109 = scmp.eq.s32.totalorder %s14, 1
      %p110 = por %p108, %p109
      %p111 = scmp.ne.s32.totalorder %s103, %s106
      %p112 = scmp.eq.s32.totalorder %s14, 0
      %p113 = por %p111, %p112
      %p114 = scmp.ne.s32.totalorder %s103, %s106
      %p115 = scmp.eq.s32.totalorder %s19, 1
      %p116 = por %p114, %p115
      %p117 = scmp.ne.s32.totalorder %s106, %s107
      %p118 = scmp.eq.s32.totalorder %s19, 0
      %p119 = por %p117, %p118
      %p120 = scmp.ne.s32.totalorder %s106, %s107
      %p121 = scmp.eq.s32.totalorder %s20, 1
      %p122 = por %p120, %p121
      %p124 = scmp.ne.s32.totalorder %s107, %s123
      %p125 = scmp.eq.s32.totalorder %s20, 0
      %p126 = por %p124, %p125
      %p127 = scmp.le.s32.totalorder 1, %s14
      %p128 = scmp.lt.s32.totalorder %s14, 3
      %p129 = pnand %p127, %p128
      %p130 = pneg %p129
      // Predicated region
      $region9: #{tpu_custom_call.1} parent=5 // pred_check
        _
      $region10: #{tpu_custom_call.1} parent=5 // pred_check_branch
        %132 = sbr.rel (%p129) target = $region12
      $region11: #{tpu_custom_call.1} parent=5 // pred_region
        %s133 = ssub.s32 %s14, 1
      $region12: #{tpu_custom_call.1} parent=5 // pred_fallthru
        _
      %p134 = scmp.lt.s32.totalorder %s14, 2
      // Predicated region
      $region13: #{tpu_custom_call.1} parent=5 // pred_check
        %p135 = pneg %p134
      $region14: #{tpu_custom_call.1} parent=5 // pred_check_branch
        %137 = sbr.rel (%p135) target = $region16
      $region15: #{tpu_custom_call.1} parent=5 // pred_region
        // Predicated region
        $region17: #{tpu_custom_call.1} parent=15 // pred_check
          %p138 = pneg %p57
        $region18: #{tpu_custom_call.1} parent=15 // pred_check_branch
          %140 = sbr.rel (%p138) target = $region20
        $region19: #{tpu_custom_call.1} parent=15 // pred_region
          %s141 = sand.u32 %s47, 1
          %s142 = scalar_lea.sflag [#allocation4], %s141
          %s143 = sand.u32 %s47, 1
          %s144 = smul.addr %s143, 8
          %s145 = scalar_lea.vmem [#allocation3], %s144
          %s146 = smul.u32 2, %s23
          %s148 = ssub.s32 128, 128
          %149 = vsyncadd %s142, %s148
          %s150 = smul.addr %s22, 2
          %s151 = sadd.s32 %s146, %s150
          %s152 = smul.addr %s21, 2
          %s153 = sadd.s32 %s151, %s152
          %s154 = smul.addr %s153, 64
          %s155 = scalar_lea.hbm %s0, %s154
          %s157 = sshll.u32 %s145, 4
          %s158 = int_to_ptr.vmem [resolvable:$true] %s157
          %160 = dma.hbm_to_vmem [thread:$0]  %s155, 128, %s158, %s142
        $region20: #{tpu_custom_call.1} parent=15 // pred_fallthru
          _
        // Predicated region
        $region21: #{tpu_custom_call.1} parent=15 // pred_check
          %p161 = pneg %p85
        $region22: #{tpu_custom_call.1} parent=15 // pred_check_branch
          %163 = sbr.rel (%p161) target = $region24
        $region23: #{tpu_custom_call.1} parent=15 // pred_region
          %s164 = sand.u32 %s75, 1
          %s165 = scalar_lea.sflag [#allocation6], %s164
          %s166 = sand.u32 %s75, 1
          %s167 = smul.addr %s166, 2
          %s168 = scalar_lea.vmem [#allocation5], %s167
          %s169 = smul.u32 2, %s23
          %s171 = ssub.s32 32, 32
          %172 = vsyncadd %s165, %s171
          %s173 = smul.addr %s21, 2
          %s174 = sadd.s32 %s169, %s173
          %s175 = smul.addr %s174, 16
          %s176 = scalar_lea.hbm %s1, %s175
          %s178 = sshll.u32 %s168, 4
          %s179 = int_to_ptr.vmem [resolvable:$true] %s178
          %181 = dma.hbm_to_vmem [thread:$0]  %s176, 32, %s179, %s165
        $region24: #{tpu_custom_call.1} parent=15 // pred_fallthru
          _
      $region16: #{tpu_custom_call.1} parent=5 // pred_fallthru
        _
      %p182 = scmp.le.s32.totalorder 1, %s14
      %p183 = scmp.lt.s32.totalorder %s14, 3
      %p184 = pnand %p182, %p183
      %p185 = pneg %p184
      // Predicated region
      $region25: #{tpu_custom_call.1} parent=5 // pred_check
        _
      $region26: #{tpu_custom_call.1} parent=5 // pred_check_branch
        %187 = sbr.rel (%p184) target = $region28
      $region27: #{tpu_custom_call.1} parent=5 // pred_region
        %s188 = ssub.s32 %s14, 1
        %s189 = sand.u32 %s50, 1
        %s190 = scalar_lea.sflag [#allocation4], %s189
        %s191 = sand.u32 %s50, 1
        %s192 = smul.addr %s191, 8
        %s193 = scalar_lea.vmem [#allocation3], %s192
        // Predicated region
        $region29: #{tpu_custom_call.1} parent=27 // pred_check
          %p194 = pneg %p63
        $region30: #{tpu_custom_call.1} parent=27 // pred_check_branch
          %196 = sbr.rel (%p194) target = $region32
        $region31: #{tpu_custom_call.1} parent=27 // pred_region
          %197 = dma.done %s190, 128
        $region32: #{tpu_custom_call.1} parent=27 // pred_fallthru
          _
        %s198 = sand.u32 %s78, 1
        %s199 = scalar_lea.sflag [#allocation6], %s198
        %s200 = sand.u32 %s78, 1
        %s201 = smul.addr %s200, 2
        %s202 = scalar_lea.vmem [#allocation5], %s201
        // Predicated region
        $region33: #{tpu_custom_call.1} parent=27 // pred_check
          %p203 = pneg %p91
        $region34: #{tpu_custom_call.1} parent=27 // pred_check_branch
          %205 = sbr.rel (%p203) target = $region36
        $region35: #{tpu_custom_call.1} parent=27 // pred_region
          %206 = dma.done %s199, 32
        $region36: #{tpu_custom_call.1} parent=27 // pred_fallthru
          _
        %s207 = sand.u32 %s50, 1
        %s208 = scalar_lea.sflag [#allocation4], %s207
        %s209 = sand.u32 %s50, 1
        %s210 = smul.addr %s209, 8
        %s211 = scalar_lea.vmem [#allocation3], %s210
        %p212 = pneg %p63
        %p213 = pneg %p60
        %s214 = sand.u32 %s78, 1
        %s215 = scalar_lea.sflag [#allocation6], %s214
        %s216 = sand.u32 %s78, 1
        %s217 = smul.addr %s216, 2
        %s218 = scalar_lea.vmem [#allocation5], %s217
        %p219 = pneg %p91
        %p220 = pneg %p88
        %p221 = pneg %p119
        %p222 = pneg %p116
        %p223 = scmp.lt.s32.totalorder %s24, 1
        %s224 = scalar_select %p223, %s24, 1
        %p225 = scmp.lt.s32.totalorder %s25, 0
        %s226 = scalar_select %p225, %s25, 0
        %s227 = sadd.s32 %s226, %s224
        %s228 = scalar_lea.vmem %s2, %s227
        %s229 = smul.u32 2, %s26
        %s230 = smul.u32 2, %s26
        %p231 = scmp.lt.s32.totalorder %s24, 1
        %s232 = scalar_select %p231, %s24, 1
        %p233 = scmp.lt.s32.totalorder %s25, 0
        %s234 = scalar_select %p233, %s25, 0
        %s235 = sadd.s32 %s234, %s232
        %s236 = scalar_lea.vmem %s2, %s235
        %p237 = scmp.eq.s32.totalorder %s26, 0
        // Predicated region
        $region37: #{tpu_custom_call.1} parent=27 // pred_check
          %p238 = pneg %p237
        $region38: #{tpu_custom_call.1} parent=27 // pred_check_branch
          %240 = sbr.rel (%p238) target = $region40
        $region39: #{tpu_custom_call.1} parent=27 // pred_region
          %vm241 = vcmask 3072
          %242 = vst.msk [vmem:[#allocation2] sm:$0xf] %vm241, 0.0
        $region40: #{tpu_custom_call.1} parent=27 // pred_fallthru
          _
        %v243 = vld [vmem:[%s193] sm:$0xff]
        %v244 = vld [vmem:[%s202] sm:$0x3]
        %v245 = vlaneseq
        %v246 = vshrl.u32 %v245, 7
        %s247 = smul.u32 %s25, 4
        %v248 = vstv %s247
        %v249 = vadd.s32 %v246, %v248
        %v250 = vlaneseq
        %v251 = vand.u32 %v250, 127
        %v252 = vadd.s32 %v251, 128
        %s253 = smul.u32 %s26, 256
        %v254 = vstv %s253
        %v255 = vadd.s32 %v251, %v254
        %v256 = vadd.s32 %v252, %v254
        %vm257 = vcmp.lt.s32.totalorder %v249, 4
        %vm258 = vcmp.lt.s32.totalorder %v255, 256
        %vm259 = vcmp.lt.s32.totalorder %v256, 256
        %vm260 = vmand %vm257, %vm258
        %vm261 = vmand %vm257, %vm259
        %v262 = vlaneseq
        %v263 = vshrl.u32 %v262, 7
        %v264 = vsub.s32 0, %v263
        %v265 = vrot.slane %v244, %v264
        %v266 = vlaneseq
        %v267 = vshrl.u32 %v266, 7
        %v268 = vsub.s32 1, %v267
        %v269 = vrot.slane %v244, %v268
        %vm270 = vcmp.eq.s32.totalorder %v265, %v249
        %vm271 = vcmp.eq.s32.totalorder %v269, %v249
        %vm272 = vcmp.ne.s32.totalorder %v244, 255
        %v273 = vsel %vm272, 1, 0
        %v274 = vlaneseq
        %v275 = vshrl.u32 %v274, 7
        %v276 = vsub.s32 0, %v275
        %v277 = vrot.slane %v273, %v276
        %v278 = vlaneseq
        %v279 = vshrl.u32 %v278, 7
        %v280 = vsub.s32 1, %v279
        %v281 = vrot.slane %v273, %v280
        %vm282 = vcmp.eq.s32.totalorder %v277, 1
        %vm283 = vcmp.eq.s32.totalorder %v281, 1
        %vm284 = vmand %vm270, %vm282
        %vm285 = vmand %vm271, %vm283
        %v286 = vsel %vm284, 1.0, 0.0
        %v287 = vsel %vm285, 1.0, 0.0
        %v288 = vand.u32 2147483647, %v243
        %v289 = vsub.f32 0.0, %v288
        %v290 = vmul.f32 %v289, 1.442695
        %v291 = vpow.pop %v290
        %v292 = vmax.f32 %v243, 0.0
        %v295 = vcombine.low %v286, %v287
        %v297 = vmul.f32 %v243, %v295
        %v298 = vsub.f32 %v292, %v297
        %vm299 = vcmp.gt.f32.partialorder %v291, 0.0001
        %v300 = vadd.f32 %v291, 1.0
        %v301 = vlog2.pop %v300
        %v302 = vmul.f32 %v301, 0.6931472
        %v303 = vmul.f32 %v291, 0.5
        %v304 = vsub.f32 1.0, %v303
        %v305 = vmul.f32 %v291, %v304
        %v306 = vsel %vm299, %v302, %v305
        %v307 = vadd.f32 %v298, %v306
        %v308 = vmul.f32 %v243, 0.5
        %v309 = vtanh.pop %v308
        %v310 = vmul.f32 %v309, 0.5
        %v311 = vadd.f32 %v310, 0.5
        %v312 = vadd.f32 %v311, %v295
        %v313 = vmul.f32 %v311, 2.0
        %v314 = vmul.f32 %v313, %v295
        %v315 = vsub.f32 %v312, %v314
        %v316 = vmul.f32 %v286, 0.5
        %v317 = vmul.f32 %v287, 0.5
        %v318 = vsub.f32 0.75, %v316
        %v319 = vsub.f32 0.75, %v317
        %v321 = vcombine.high %v307, %v307
        %v323 = vmul.f32 %v318, %v307
        %v324 = vmul.f32 %v319, %v321
        %v326 = vcombine.high %v315, %v315
        %v328 = vmul.f32 %v323, %v315
        %v329 = vmul.f32 %v324, %v326
        %v330 = vmul.f32 %v328, %v315
        %v331 = vmul.f32 %v329, %v326
        %v332 = vsel %vm260, %v330, 0.0
        %v333 = vsel %vm261, %v331, 0.0
        %v334 = vld [vmem:[#allocation2] sm:$0xf]
        %vm335 = vcmask 1043456
        %v336 = vsel %vm335, %v332, 0.0
        %v337 = vsel %vm335, %v333, 0.0
        %v338 = vadd.f32 %v336, %v337
        %339 = vadd.xlane.f32.xlu0 %v338
        %v340 = vpop.xlane.xlu0 %339
        %v341 = vadd.f32 %v334, %v340
        %vm342 = vcmask 3072
        %343 = vst.msk [vmem:[#allocation2] sm:$0xf] %vm342, %v341
        // Predicated region
        $region41: #{tpu_custom_call.1} parent=27 // pred_check
          %p344 = pneg %p237
        $region42: #{tpu_custom_call.1} parent=27 // pred_check_branch
          %346 = sbr.rel (%p344) target = $region44
        $region43: #{tpu_custom_call.1} parent=27 // pred_region
          %v347 = vld [vmem:[#allocation2] sm:$0xf]
          %v348 = vsel %vm342, %v347, 0.0
          %349 = vadd.xlane.f32.xlu0 %v348
          %v350 = vpop.xlane.xlu0 %349
          %v351 = vrot.slane %v350, 4
          %v352 = vadd.f32 %v350, %v351
          %v353 = vrot.slane %v352, 2
          %v354 = vadd.f32 %v352, %v353
          %v355 = vrot.slane %v354, 1
          %v356 = vadd.f32 %v354, %v355
          %s357 = vtos %v356
          %v358 = vstv %s357
          %vm359 = vcmask 0
          %360 = vst.msk [vmem:[%s236] sm:$0x1] %vm359, %v358
        $region44: #{tpu_custom_call.1} parent=27 // pred_fallthru
          _
        %p361 = scmp.lt.s32.totalorder %s24, 1
        %s362 = scalar_select %p361, %s24, 1
        %p363 = scmp.lt.s32.totalorder %s25, 0
        %s364 = scalar_select %p363, %s25, 0
        %s365 = sadd.s32 %s364, %s362
        %s366 = scalar_lea.vmem %s2, %s365
        // Predicated region
        $region45: #{tpu_custom_call.1} parent=27 // pred_check
          %p367 = pneg %p116
        $region46: #{tpu_custom_call.1} parent=27 // pred_check_branch
          %369 = sbr.rel (%p367) target = $region48
        $region47: #{tpu_custom_call.1} parent=27 // pred_region
          _
        $region48: #{tpu_custom_call.1} parent=27 // pred_fallthru
          _
      $region28: #{tpu_custom_call.1} parent=5 // pred_fallthru
        _
      %p370 = scmp.le.s32.totalorder 2, %s14
      // Predicated region
      $region49: #{tpu_custom_call.1} parent=5 // pred_check
        %p371 = pneg %p370
      $region50: #{tpu_custom_call.1} parent=5 // pred_check_branch
        %373 = sbr.rel (%p371) target = $region52
      $region51: #{tpu_custom_call.1} parent=5 // pred_region
        %s374 = ssub.s32 %s14, 2
        // Predicated region
        $region53: #{tpu_custom_call.1} parent=51 // pred_check
          %p375 = pneg %p122
        $region54: #{tpu_custom_call.1} parent=51 // pred_check_branch
          %377 = sbr.rel (%p375) target = $region56
        $region55: #{tpu_custom_call.1} parent=51 // pred_region
          %p378 = scmp.lt.s32.totalorder %s27, 1
          %s379 = scalar_select %p378, %s27, 1
          %p380 = scmp.lt.s32.totalorder %s28, 0
          %s381 = scalar_select %p380, %s28, 0
          %s382 = sadd.s32 %s381, %s379
          %s383 = scalar_lea.vmem %s2, %s382
        $region56: #{tpu_custom_call.1} parent=51 // pred_fallthru
          _
      $region52: #{tpu_custom_call.1} parent=5 // pred_fallthru
        _
    $region6: #{tpu_custom_call.1} parent=1 // loop_footer
      %s18 = sadd.s32 1, %s14
    $region7: #{tpu_custom_call.1} parent=1 // loop_footer_branch
      %13 = sbr.rel target = $region3
    $region8: #{tpu_custom_call.1} parent=1 // loop_exit
      _
    %384 = vsyncpa [#allocation4], 1
    %s385 = scalar_lea.sflag [#allocation4], 1
    %386 = vsyncpa %s385, 1
    %387 = vsyncpa [#allocation6], 1
    %s388 = scalar_lea.sflag [#allocation6], 1
    %389 = vsyncpa %s388, 1

</llo_original>
